<compile_context>
chip_gen: v6e
topology: v6e:2x2x1
jax: 0.10.0
libtpu: 0.0.40
codegen_flags: <defaults>
</compile_context>

<pallas_src>
import functools
import math

import numpy as np
import jax
import jax.numpy as jnp
from jax.experimental import pallas as pl
from jax.experimental.pallas import tpu as pltpu


def _round_up(x, m):
    return (x + m - 1) // m * m


def _elu(x):
    # ELU(alpha=1) in f32.
    return jnp.where(x > 0, x, jnp.exp(jnp.minimum(x, 0.0)) - 1.0)


def _lcgn_head_kernel(out_question_mul, carry_hidden, tm, *refs):
    if out_question_mul:
        (x_ref, vq_ref, wq_ref, bq_ref, w1x_ref, w1q_ref, w1m_ref, b1_ref,
         w2_ref, b2_ref, out_ref, *scratch) = refs
    else:
        (x_ref, vq_ref, wq_ref, bq_ref, w1x_ref, w1q_ref, b1_ref,
         w2_ref, b2_ref, out_ref, *scratch) = refs
        w1m_ref = None

    def stage1():
        # eQ = vecQ @ Wq + bq ; h = ELU(features @ W1 + b1) with the concat
        # expanded into per-chunk matmuls (never materialized).
        vq = vq_ref[...]                                          # [tm, D] bf16
        eq = jnp.dot(vq, wq_ref[...],
                     preferred_element_type=jnp.float32) + bq_ref[...]
        eq = eq.astype(vq.dtype)                                  # [tm, D] bf16
        x = x_ref[...]                                            # [tm, D] bf16
        h = jnp.dot(x, w1x_ref[...], preferred_element_type=jnp.float32)
        h = h + jnp.dot(eq, w1q_ref[...], preferred_element_type=jnp.float32)
        if w1m_ref is not None:
            h = h + jnp.dot(x * eq, w1m_ref[...],
                            preferred_element_type=jnp.float32)
        return _elu(h + b1_ref[...])                              # [tm, D] f32

    if carry_hidden:
        # Several output tiles: compute stage 1 once per batch tile during the
        # j == 0 sweep, cache it in VMEM, reuse for every later W2 tile.
        h_ref, = scratch
        j = pl.program_id(0)
        i = pl.program_id(1)
        row0 = pl.multiple_of(i * tm, tm)

        @pl.when(j == 0)
        def _():
            h_ref[pl.ds(row0, tm), :] = stage1().astype(h_ref.dtype)

        h = h_ref[pl.ds(row0, tm), :]
    else:
        # Single output tile: stage 1 + stage 2 fused, no scratch round trip.
        h = stage1().astype(x_ref.dtype)

    logits = jnp.dot(h, w2_ref[...], preferred_element_type=jnp.float32)
    out_ref[...] = (logits + b2_ref[...]).astype(out_ref.dtype)


def make_lcgn_classifier_head(wq, bq, w1, b1, w2, b2, *,
                              out_question_mul=True,
                              compute_dtype=jnp.bfloat16,
                              out_dtype=jnp.float32,
                              tm=256, tn=2048,
                              min_batch_tiles=1,
                              interpret=False):
    """Prepare parameters ONCE; return forward(x_att, vecQuestions) -> logits.

    Parameters in PyTorch nn.Linear layout:
      wq: [D, D], bq: [D]                         (outQuestion)
      w1: [D, F], b1: [D]   F = 3*D (mul) / 2*D   (first classifier Linear)
      w2: [out_dim, D], b2: [out_dim]             (final classifier Linear)
    Knobs: tn=512 is a better default on v5e (smallest scoped VMEM);
    min_batch_tiles=2 keeps both v7x TensorCores busy for small batches;
    out_dtype=bf16 halves the logits writeback if the caller tolerates it.
    """
    D = wq.shape[0]
    out_dim = w2.shape[0]
    n_chunks = 3 if out_question_mul else 2
    assert wq.shape == (D, D) and w1.shape == (D, n_chunks * D)
    assert w2.shape == (out_dim, D) and b2.shape == (out_dim,)
    assert D % 128 == 0, "CMD_DIM must be a multiple of 128"
    cdt = compute_dtype
    csize = np.dtype(cdt).itemsize
    osize = np.dtype(out_dtype).itemsize
    row_mult = max(8, 32 // csize)                 # 8 for f32, 16 for bf16
    assert tm % row_mult == 0 and tn % 128 == 0

    # --- one-time parameter preparation (NOT on the per-call path) -----------
    wq_t = jnp.asarray(wq, cdt).T                  # [D, D]   (K, N)
    w1_t = jnp.asarray(w1, cdt).T                  # [F, D]
    w1x_t = w1_t[0:D]
    w1q_t = w1_t[D:2 * D]
    w1m_t = w1_t[2 * D:3 * D] if out_question_mul else None
    bq2 = jnp.asarray(bq, jnp.float32).reshape(1, D)
    b12 = jnp.asarray(b1, jnp.float32).reshape(1, D)

    tn_eff = min(tn, _round_up(out_dim, 128))      # lane-dense output tile
    out_pad = _round_up(out_dim, tn_eff)
    grid_j = out_pad // tn_eff
    carry_hidden = grid_j > 1

    w2_t = jnp.asarray(w2, cdt).T                  # [D, out_dim]
    b22 = jnp.asarray(b2, jnp.float32).reshape(1, out_dim)
    if out_pad != out_dim:
        w2_t = jnp.pad(w2_t, ((0, 0), (0, out_pad - out_dim)))
        b22 = jnp.pad(b22, ((0, 0), (0, out_pad - out_dim)))

    base_kernel = functools.partial(_lcgn_head_kernel, out_question_mul,
                                    carry_hidden)

    def forward(x_att, vec_questions):
        B = x_att.shape[0]
        assert x_att.shape == (B, D) and vec_questions.shape == (B, D)

        # Batch tiling with minimal padding for ragged B.
        n_tiles = max(min_batch_tiles, math.ceil(B / tm), 1)
        tm_eff = _round_up(math.ceil(B / n_tiles), row_mult)
        b_pad = tm_eff * n_tiles
        grid_i = n_tiles

        x = jnp.asarray(x_att, cdt)
        vq = jnp.asarray(vec_questions, cdt)
        if b_pad != B:
            x = jnp.pad(x, ((0, b_pad - B), (0, 0)))
            vq = jnp.pad(vq, ((0, b_pad - B), (0, 0)))

        grid = (grid_j, grid_i)                    # j OUTER, i INNER

        once = dict(pipeline_mode=pl.Buffered(1))  # fetched once, never again
        if carry_hidden:
            # x / vecQ are only consumed at j == 0: pin their block index for
            # j > 0 so activations are not re-streamed on later W2 sweeps.
            row_idx = lambda j, i: (jnp.where(j == 0, i, 0), 0)
            w2_mode = {}                           # W2 tiles stream: 2 buffers
        else:
            row_idx = lambda j, i: (i, 0)
            w2_mode = once                         # whole W2 fetched once

        row_spec = pl.BlockSpec((tm_eff, D), row_idx)
        full_w = pl.BlockSpec((D, D), lambda j, i: (0, 0), **once)
        vec_d = pl.BlockSpec((1, D), lambda j, i: (0, 0), **once)

        in_specs = [row_spec, row_spec, full_w, vec_d, full_w, full_w]
        inputs = [x, vq, wq_t, bq2, w1x_t, w1q_t]
        if out_question_mul:
            in_specs.append(full_w)
            inputs.append(w1m_t)
        in_specs += [vec_d,
                     pl.BlockSpec((D, tn_eff), lambda j, i: (0, j), **w2_mode),
                     pl.BlockSpec((1, tn_eff), lambda j, i: (0, j), **w2_mode)]
        inputs += [b12, w2_t, b22]

        scratch_shapes = []
        if carry_hidden:
            # TODO(synk): for very large B combined with out_dim >> tn the
            # full-batch hidden cache may not fit VMEM; tile B at the caller.
            scratch_shapes.append(pltpu.VMEM((b_pad, D), cdt))

        # Advisory cost (single pass over every weight) + explicit VMEM budget.
        flops = 2 * b_pad * D * ((1 + n_chunks) * D + out_pad)
        bytes_acc = (2 * b_pad * D * csize                      # x, vq
                     + (1 + n_chunks) * D * D * csize           # Wq + W1 chunks
                     + D * out_pad * csize                      # W2 (one pass)
                     + (2 * D + out_pad) * 4                    # f32 biases
                     + b_pad * out_pad * osize)                 # logits out
        w2_bufs = 2 if carry_hidden else 1
        vmem_need = ((1 + n_chunks) * D * D * csize + 2 * D * 4      # invariants
                     + 2 * (2 * tm_eff * D * csize)                  # x, vq
                     + 2 * tm_eff * tn_eff * osize                   # out
                     + w2_bufs * (D * tn_eff * csize + tn_eff * 4)   # W2 + b2
                     + (b_pad * D * csize if carry_hidden else 0))   # h cache
        vmem_limit = vmem_need * 5 // 4 + (1 << 20)
        vmem_limit = int(min(64 << 20, vmem_limit)) if vmem_limit > (16 << 20) \
            else None

        kernel = functools.partial(base_kernel, tm_eff)

        logits = pl.pallas_call(
            kernel,
            out_shape=jax.ShapeDtypeStruct((b_pad, out_pad), out_dtype),
            grid=grid,
            in_specs=in_specs,
            out_specs=pl.BlockSpec((tm_eff, tn_eff), lambda j, i: (i, j)),
            scratch_shapes=scratch_shapes,
            compiler_params=pltpu.CompilerParams(
                dimension_semantics=("arbitrary", "parallel"),
                vmem_limit_bytes=vmem_limit,
            ),
            cost_estimate=pl.CostEstimate(
                flops=int(flops),
                transcendentals=int(b_pad * D),
                bytes_accessed=int(bytes_acc)),
            interpret=interpret,
        )(*inputs)

        return logits[:B, :out_dim]

    return jax.jit(forward)


if __name__ == "__main__":
    def lin_init(kw, kb, out_d, in_d):
        bound = 1.0 / math.sqrt(in_d)
        w = jax.random.uniform(kw, (out_d, in_d), jnp.float32, -bound, bound)
        b = jax.random.uniform(kb, (out_d,), jnp.float32, -bound, bound)
        return w, b

    def reference(x_att, vecq, wq, bq, w1, b1, w2, b2, mul, cdt=jnp.bfloat16):
        # Pure-JAX reference (bf16 operands, f32 accumulation, eval dropout).
        xr = x_att.astype(cdt)
        vr = vecq.astype(cdt)
        eq = (jnp.dot(vr, wq.T.astype(cdt),
                      preferred_element_type=jnp.float32) + bq).astype(cdt)
        feats = jnp.concatenate([xr, eq, xr * eq] if mul else [xr, eq], -1)
        h = jnp.dot(feats, w1.T.astype(cdt),
                    preferred_element_type=jnp.float32) + b1
        h = _elu(h).astype(cdt)
        return jnp.dot(h, w2.T.astype(cdt),
                       preferred_element_type=jnp.float32) + b2

    key = jax.random.PRNGKey(0)

    # --- Case 1: small module-like shapes; single fused grid step ------------
    B, D, OUT, MUL = 2, 128, 32, True
    F = (3 if MUL else 2) * D
    ks = jax.random.split(key, 8)
    wq, bq = lin_init(ks[0], ks[1], D, D)        # outQuestion: Linear(D, D)
    w1, b1 = lin_init(ks[2], ks[3], D, F)        # Linear(3*D, D)
    w2, b2 = lin_init(ks[4], ks[5], OUT, D)      # Linear(D, out_dim)
    x_att = jax.random.normal(ks[6], (B, D), jnp.float32)
    vecq = jax.random.normal(ks[7], (B, D), jnp.float32)

    head = make_lcgn_classifier_head(wq, bq, w1, b1, w2, b2,
                                     out_question_mul=MUL)
    out = jax.block_until_ready(head(x_att, vecq))
    ref = reference(x_att, vecq, wq, bq, w1, b1, w2, b2, MUL)
    assert out.shape == (B, OUT), out.shape
    err1 = jnp.max(jnp.abs(out - ref))
    assert jnp.allclose(out, ref, atol=2e-2, rtol=2e-2), f"case1 max err {err1}"

    # --- Case 2: multi-tile batch + multi-tile out_dim (carried hidden cache,
    #             OUT_QUESTION_MUL=False branch) ------------------------------
    B2, OUT2, MUL2 = 40, 320, False
    F2 = (3 if MUL2 else 2) * D
    ks = jax.random.split(jax.random.PRNGKey(1), 8)
    wq_b, bq_b = lin_init(ks[0], ks[1], D, D)
    w1_b, b1_b = lin_init(ks[2], ks[3], D, F2)
    w2_b, b2_b = lin_init(ks[4], ks[5], OUT2, D)
    x2 = jax.random.normal(ks[6], (B2, D), jnp.float32)
    v2 = jax.random.normal(ks[7], (B2, D), jnp.float32)

    head2 = make_lcgn_classifier_head(wq_b, bq_b, w1_b, b1_b, w2_b, b2_b,
                                      out_question_mul=MUL2, tm=16, tn=128,
                                      min_batch_tiles=2)
    out2 = jax.block_until_ready(head2(x2, v2))
    ref2 = reference(x2, v2, wq_b, bq_b, w1_b, b1_b, w2_b, b2_b, MUL2)
    assert out2.shape == (B2, OUT2), out2.shape
    err2 = jnp.max(jnp.abs(out2 - ref2))
    assert jnp.allclose(out2, ref2, atol=2e-2, rtol=2e-2), f"case2 max err {err2}"

    print("KERNEL_OK")
</pallas_src>

<mosaic_0001>
module attributes {stable_mosaic.version = 11 : i64} {
  func.func @_lcgn_head_kernel(%arg0: i32, %arg1: i32, %arg2: memref<16x128xbf16, #tpu.memory_space<vmem>>, %arg3: memref<16x128xbf16, #tpu.memory_space<vmem>>, %arg4: memref<128x128xbf16, #tpu.memory_space<vmem>>, %arg5: memref<1x128xf32, #tpu.memory_space<vmem>>, %arg6: memref<128x128xbf16, #tpu.memory_space<vmem>>, %arg7: memref<128x128xbf16, #tpu.memory_space<vmem>>, %arg8: memref<128x128xbf16, #tpu.memory_space<vmem>>, %arg9: memref<1x128xf32, #tpu.memory_space<vmem>>, %arg10: memref<128x128xbf16, #tpu.memory_space<vmem>>, %arg11: memref<1x128xf32, #tpu.memory_space<vmem>>, %arg12: memref<16x128xf32, #tpu.memory_space<vmem>>) attributes {dimension_semantics = [#tpu.dimension_semantics<arbitrary>, #tpu.dimension_semantics<parallel>], iteration_bounds = array<i64: 1, 1>, scalar_prefetch = 0 : i64, scratch_operands = 0 : i64, tpu.core_type = #tpu.core_type<tc>, window_params = [{transform_indices = @transform_0, window_bounds = array<i64: 16, 128>}, {transform_indices = @transform_1, window_bounds = array<i64: 16, 128>}, {pipeline_mode = #tpu.pipeline_mode<synchronous>, transform_indices = @transform_2, window_bounds = array<i64: 128, 128>}, {pipeline_mode = #tpu.pipeline_mode<synchronous>, transform_indices = @transform_3, window_bounds = array<i64: 1, 128>}, {pipeline_mode = #tpu.pipeline_mode<synchronous>, transform_indices = @transform_4, window_bounds = array<i64: 128, 128>}, {pipeline_mode = #tpu.pipeline_mode<synchronous>, transform_indices = @transform_5, window_bounds = array<i64: 128, 128>}, {pipeline_mode = #tpu.pipeline_mode<synchronous>, transform_indices = @transform_6, window_bounds = array<i64: 128, 128>}, {pipeline_mode = #tpu.pipeline_mode<synchronous>, transform_indices = @transform_7, window_bounds = array<i64: 1, 128>}, {pipeline_mode = #tpu.pipeline_mode<synchronous>, transform_indices = @transform_8, window_bounds = array<i64: 128, 128>}, {pipeline_mode = #tpu.pipeline_mode<synchronous>, transform_indices = @transform_9, window_bounds = array<i64: 1, 128>}, {transform_indices = @transform_10, window_bounds = array<i64: 16, 128>}]} {
    %c0 = arith.constant 0 : index
    %c0_0 = arith.constant 0 : index
    %0 = vector.load %arg3[%c0, %c0_0] : memref<16x128xbf16, #tpu.memory_space<vmem>>, vector<16x128xbf16>
    %c0_1 = arith.constant 0 : index
    %c0_2 = arith.constant 0 : index
    %1 = vector.load %arg4[%c0_1, %c0_2] : memref<128x128xbf16, #tpu.memory_space<vmem>>, vector<128x128xbf16>
    %cst = arith.constant dense<0.000000e+00> : vector<16x128xf32>
    %2 = tpu.matmul %0, %1, %cst {dimension_numbers = #tpu.dot_dimension_numbers<[1], [0], [0], [1], [0, 0, 1, 1], [], []>} : vector<16x128xbf16>, vector<128x128xbf16>, vector<16x128xf32> -> vector<16x128xf32>
    %c0_3 = arith.constant 0 : index
    %c0_4 = arith.constant 0 : index
    %3 = vector.load %arg5[%c0_3, %c0_4] : memref<1x128xf32, #tpu.memory_space<vmem>>, vector<1x128xf32>
    %4 = vector.broadcast %3 : vector<1x128xf32> to vector<16x128xf32>
    %5 = arith.addf %2, %4 : vector<16x128xf32>
    %6 = arith.truncf %5 : vector<16x128xf32> to vector<16x128xbf16>
    %c0_5 = arith.constant 0 : index
    %c0_6 = arith.constant 0 : index
    %7 = vector.load %arg2[%c0_5, %c0_6] : memref<16x128xbf16, #tpu.memory_space<vmem>>, vector<16x128xbf16>
    %c0_7 = arith.constant 0 : index
    %c0_8 = arith.constant 0 : index
    %8 = vector.load %arg6[%c0_7, %c0_8] : memref<128x128xbf16, #tpu.memory_space<vmem>>, vector<128x128xbf16>
    %cst_9 = arith.constant dense<0.000000e+00> : vector<16x128xf32>
    %9 = tpu.matmul %7, %8, %cst_9 {dimension_numbers = #tpu.dot_dimension_numbers<[1], [0], [0], [1], [0, 0, 1, 1], [], []>} : vector<16x128xbf16>, vector<128x128xbf16>, vector<16x128xf32> -> vector<16x128xf32>
    %c0_10 = arith.constant 0 : index
    %c0_11 = arith.constant 0 : index
    %10 = vector.load %arg7[%c0_10, %c0_11] : memref<128x128xbf16, #tpu.memory_space<vmem>>, vector<128x128xbf16>
    %cst_12 = arith.constant dense<0.000000e+00> : vector<16x128xf32>
    %11 = tpu.matmul %6, %10, %cst_12 {dimension_numbers = #tpu.dot_dimension_numbers<[1], [0], [0], [1], [0, 0, 1, 1], [], []>} : vector<16x128xbf16>, vector<128x128xbf16>, vector<16x128xf32> -> vector<16x128xf32>
    %12 = arith.addf %9, %11 : vector<16x128xf32>
    %13 = arith.mulf %7, %6 : vector<16x128xbf16>
    %c0_13 = arith.constant 0 : index
    %c0_14 = arith.constant 0 : index
    %14 = vector.load %arg8[%c0_13, %c0_14] : memref<128x128xbf16, #tpu.memory_space<vmem>>, vector<128x128xbf16>
    %cst_15 = arith.constant dense<0.000000e+00> : vector<16x128xf32>
    %15 = tpu.matmul %13, %14, %cst_15 {dimension_numbers = #tpu.dot_dimension_numbers<[1], [0], [0], [1], [0, 0, 1, 1], [], []>} : vector<16x128xbf16>, vector<128x128xbf16>, vector<16x128xf32> -> vector<16x128xf32>
    %16 = arith.addf %12, %15 : vector<16x128xf32>
    %c0_16 = arith.constant 0 : index
    %c0_17 = arith.constant 0 : index
    %17 = vector.load %arg9[%c0_16, %c0_17] : memref<1x128xf32, #tpu.memory_space<vmem>>, vector<1x128xf32>
    %18 = vector.broadcast %17 : vector<1x128xf32> to vector<16x128xf32>
    %19 = arith.addf %16, %18 : vector<16x128xf32>
    %cst_18 = arith.constant 0.000000e+00 : f32
    %20 = vector.broadcast %cst_18 : f32 to vector<16x128xf32>
    %21 = arith.cmpf ogt, %19, %20 : vector<16x128xf32>
    %cst_19 = arith.constant 0.000000e+00 : f32
    %22 = vector.broadcast %cst_19 : f32 to vector<16x128xf32>
    %23 = arith.minimumf %19, %22 : vector<16x128xf32>
    %24 = math.exp %23 : vector<16x128xf32>
    %cst_20 = arith.constant 1.000000e+00 : f32
    %25 = vector.broadcast %cst_20 : f32 to vector<16x128xf32>
    %26 = arith.subf %24, %25 : vector<16x128xf32>
    %27 = arith.select %21, %19, %26 : vector<16x128xi1>, vector<16x128xf32>
    %28 = arith.truncf %27 : vector<16x128xf32> to vector<16x128xbf16>
    %c0_21 = arith.constant 0 : index
    %c0_22 = arith.constant 0 : index
    %29 = vector.load %arg10[%c0_21, %c0_22] : memref<128x128xbf16, #tpu.memory_space<vmem>>, vector<128x128xbf16>
    %cst_23 = arith.constant dense<0.000000e+00> : vector<16x128xf32>
    %30 = tpu.matmul %28, %29, %cst_23 {dimension_numbers = #tpu.dot_dimension_numbers<[1], [0], [0], [1], [0, 0, 1, 1], [], []>} : vector<16x128xbf16>, vector<128x128xbf16>, vector<16x128xf32> -> vector<16x128xf32>
    %c0_24 = arith.constant 0 : index
    %c0_25 = arith.constant 0 : index
    %31 = vector.load %arg11[%c0_24, %c0_25] : memref<1x128xf32, #tpu.memory_space<vmem>>, vector<1x128xf32>
    %32 = vector.broadcast %31 : vector<1x128xf32> to vector<16x128xf32>
    %33 = arith.addf %30, %32 : vector<16x128xf32>
    %c0_26 = arith.constant 0 : index
    %c0_27 = arith.constant 0 : index
    %34 = vector.load %arg12[%c0_26, %c0_27] : memref<16x128xf32, #tpu.memory_space<vmem>>, vector<16x128xf32>
    tpu.vector_store %arg12[%c0_26, %c0_27], %33 {strides = array<i32>} : memref<16x128xf32, #tpu.memory_space<vmem>>, vector<16x128xf32>,
    return
  }
  func.func @transform_0(%arg0: i32, %arg1: i32) -> (i32, i32) {
    %c0_i32 = arith.constant 0 : i32
    %c0_i32_0 = arith.constant 0 : i32
    return %arg1, %c0_i32 : i32, i32
  }
  func.func @transform_1(%arg0: i32, %arg1: i32) -> (i32, i32) {
    %c0_i32 = arith.constant 0 : i32
    %c0_i32_0 = arith.constant 0 : i32
    return %arg1, %c0_i32 : i32, i32
  }
  func.func @transform_2(%arg0: i32, %arg1: i32) -> (i32, i32) {
    %c0_i32 = arith.constant 0 : i32
    %c0_i32_0 = arith.constant 0 : i32
    %c0_i32_1 = arith.constant 0 : i32
    return %c0_i32, %c0_i32_0 : i32, i32
  }
  func.func @transform_3(%arg0: i32, %arg1: i32) -> (i32, i32) {
    %c0_i32 = arith.constant 0 : i32
    %c0_i32_0 = arith.constant 0 : i32
    %c0_i32_1 = arith.constant 0 : i32
    return %c0_i32, %c0_i32_0 : i32, i32
  }
  func.func @transform_4(%arg0: i32, %arg1: i32) -> (i32, i32) {
    %c0_i32 = arith.constant 0 : i32
    %c0_i32_0 = arith.constant 0 : i32
    %c0_i32_1 = arith.constant 0 : i32
    return %c0_i32, %c0_i32_0 : i32, i32
  }
  func.func @transform_5(%arg0: i32, %arg1: i32) -> (i32, i32) {
    %c0_i32 = arith.constant 0 : i32
    %c0_i32_0 = arith.constant 0 : i32
    %c0_i32_1 = arith.constant 0 : i32
    return %c0_i32, %c0_i32_0 : i32, i32
  }
  func.func @transform_6(%arg0: i32, %arg1: i32) -> (i32, i32) {
    %c0_i32 = arith.constant 0 : i32
    %c0_i32_0 = arith.constant 0 : i32
    %c0_i32_1 = arith.constant 0 : i32
    return %c0_i32, %c0_i32_0 : i32, i32
  }
  func.func @transform_7(%arg0: i32, %arg1: i32) -> (i32, i32) {
    %c0_i32 = arith.constant 0 : i32
    %c0_i32_0 = arith.constant 0 : i32
    %c0_i32_1 = arith.constant 0 : i32
    return %c0_i32, %c0_i32_0 : i32, i32
  }
  func.func @transform_8(%arg0: i32, %arg1: i32) -> (i32, i32) {
    %c0_i32 = arith.constant 0 : i32
    %c0_i32_0 = arith.constant 0 : i32
    return %c0_i32, %arg0 : i32, i32
  }
  func.func @transform_9(%arg0: i32, %arg1: i32) -> (i32, i32) {
    %c0_i32 = arith.constant 0 : i32
    %c0_i32_0 = arith.constant 0 : i32
    return %c0_i32, %arg0 : i32, i32
  }
  func.func @transform_10(%arg0: i32, %arg1: i32) -> (i32, i32) {
    %c0_i32 = arith.constant 0 : i32
    return %arg1, %arg0 : i32, i32
  }
}

</mosaic_0001>

<llo_original>
// kernel: forward.1
$region0: #{forward.1}
  #allocation0 [shape = 'u32[]', space=smem, size = 0x4, offset = 0x4, fixed_abs, tag = 'smem constant byte address 0x4 - core index']
  #allocation1 [shape = 'u32[144,128]{1,0:T(1,128)}', space=vmem, size = 0x12000, scoped, tag = 'internal scratch']
  %s0 = inlined_call_operand.vmem [shape: bf16[16,128], index: 0, kind: input, shape index: {}]
  %s1 = inlined_call_operand.vmem [shape: bf16[16,128], index: 1, kind: input, shape index: {}]
  %s2 = inlined_call_operand.hbm [shape: bf16[128,128], index: 2, kind: input, shape index: {}]
  %s3 = inlined_call_operand.vmem [shape: f32[1,128], index: 3, kind: input, shape index: {}]
  %s4 = inlined_call_operand.hbm [shape: bf16[128,128], index: 4, kind: input, shape index: {}]
  %s5 = inlined_call_operand.hbm [shape: bf16[128,128], index: 5, kind: input, shape index: {}]
  %s6 = inlined_call_operand.hbm [shape: bf16[128,128], index: 6, kind: input, shape index: {}]
  %s7 = inlined_call_operand.vmem [shape: f32[1,128], index: 7, kind: input, shape index: {}]
  %s8 = inlined_call_operand.hbm [shape: bf16[128,128], index: 8, kind: input, shape index: {}]
  %s9 = inlined_call_operand.vmem [shape: f32[1,128], index: 9, kind: input, shape index: {}]
  %s10 = inlined_call_operand.vmem [shape: f32[16,128], index: 10, kind: output, shape index: {}]
  %s11 = sld [smem:[#allocation0]]
  $region70: #{forward.1} parent=0
    _
  %s13 = ssub.s32 1, %s11
  %s14 = scalar_select 0, %s13, %s11
  $region1: #{forward.1} parent=0
    #allocation2 [shape = 'u8[32768]{0}', space=vmem, size = 0x8000, scoped, tag = 'input window, operand 2, single buffered']
    #allocation3 [shape = 's32[1]{0}', space=sflag, size = 0x4, scoped, tag = 'scoped memory for forward.1']
    #allocation4 [shape = 'u8[32768]{0}', space=vmem, size = 0x8000, scoped, tag = 'input window, operand 4, single buffered']
    #allocation5 [shape = 's32[1]{0}', space=sflag, size = 0x4, scoped, tag = 'scoped memory for forward.1']
    #allocation6 [shape = 'u8[32768]{0}', space=vmem, size = 0x8000, scoped, tag = 'input window, operand 5, single buffered']
    #allocation7 [shape = 'u8[32768]{0}', space=vmem, size = 0x8000, scoped, tag = 'input window, operand 6, single buffered']
    #allocation8 [shape = 's32[1]{0}', space=sflag, size = 0x4, scoped, tag = 'scoped memory for forward.1']
    #allocation9 [shape = 'u8[32768]{0}', space=vmem, size = 0x8000, scoped, tag = 'input window, operand 8, single buffered']
    %15 = vsyncpa [#allocation3], 0
    %16 = vsyncpa [#allocation5], 0
    %17 = vsyncpa [#allocation8], 0
    // Predicated region
    $region2: #{forward.1} parent=1 // pred_check
      _
    $region3: #{forward.1} parent=1 // pred_check_branch
      %19 = sbr.rel (0) target = $region5
    $region4: #{forward.1} parent=1 // pred_region
      _
    $region5: #{forward.1} parent=1 // pred_fallthru
      _
    // Predicated region
    $region6: #{forward.1} parent=1 // pred_check
      _
    $region7: #{forward.1} parent=1 // pred_check_branch
      %21 = sbr.rel (0) target = $region9
    $region8: #{forward.1} parent=1 // pred_region
      _
    $region9: #{forward.1} parent=1 // pred_fallthru
      _
    // Predicated region
    $region10: #{forward.1} parent=1 // pred_check
      _
    $region11: #{forward.1} parent=1 // pred_check_branch
      %23 = sbr.rel (0) target = $region13
    $region12: #{forward.1} parent=1 // pred_region
      %s25 = ssub.s32 1024, 1024
      %26 = vsyncadd [#allocation3], %s25
      %s27 = sshll.u32 [#allocation2], 4
      %s28 = int_to_ptr.vmem [resolvable:$true] %s27
      %33 = dma.hbm_to_vmem [thread:$0]  %s2, 1024, %s28, [#allocation3], 64, 64, 4
    $region13: #{forward.1} parent=1 // pred_fallthru
      _
    // Predicated region
    $region14: #{forward.1} parent=1 // pred_check
      _
    $region15: #{forward.1} parent=1 // pred_check_branch
      %35 = sbr.rel (0) target = $region17
    $region16: #{forward.1} parent=1 // pred_region
      _
    $region17: #{forward.1} parent=1 // pred_fallthru
      _
    // Predicated region
    $region18: #{forward.1} parent=1 // pred_check
      _
    $region19: #{forward.1} parent=1 // pred_check_branch
      %37 = sbr.rel (0) target = $region21
    $region20: #{forward.1} parent=1 // pred_region
      %s39 = ssub.s32 1024, 1024
      %40 = vsyncadd [#allocation5], %s39
      %s41 = sshll.u32 [#allocation4], 4
      %s42 = int_to_ptr.vmem [resolvable:$true] %s41
      %47 = dma.hbm_to_vmem [thread:$0]  %s4, 1024, %s42, [#allocation5], 64, 64, 4
    $region21: #{forward.1} parent=1 // pred_fallthru
      _
    // Predicated region
    $region22: #{forward.1} parent=1 // pred_check
      _
    $region23: #{forward.1} parent=1 // pred_check_branch
      %49 = sbr.rel (0) target = $region25
    $region24: #{forward.1} parent=1 // pred_region
      %s51 = ssub.s32 1024, 1024
      %52 = vsyncadd [#allocation5], %s51
      %s53 = sshll.u32 [#allocation6], 4
      %s54 = int_to_ptr.vmem [resolvable:$true] %s53
      %59 = dma.hbm_to_vmem [thread:$0]  %s5, 1024, %s54, [#allocation5], 64, 64, 4
    $region25: #{forward.1} parent=1 // pred_fallthru
      _
    // Predicated region
    $region26: #{forward.1} parent=1 // pred_check
      _
    $region27: #{forward.1} parent=1 // pred_check_branch
      %61 = sbr.rel (0) target = $region29
    $region28: #{forward.1} parent=1 // pred_region
      %s63 = ssub.s32 1024, 1024
      %64 = vsyncadd [#allocation8], %s63
      %s65 = sshll.u32 [#allocation7], 4
      %s66 = int_to_ptr.vmem [resolvable:$true] %s65
      %71 = dma.hbm_to_vmem [thread:$0]  %s6, 1024, %s66, [#allocation8], 64, 64, 4
    $region29: #{forward.1} parent=1 // pred_fallthru
      _
    // Predicated region
    $region30: #{forward.1} parent=1 // pred_check
      _
    $region31: #{forward.1} parent=1 // pred_check_branch
      %73 = sbr.rel (0) target = $region33
    $region32: #{forward.1} parent=1 // pred_region
      _
    $region33: #{forward.1} parent=1 // pred_fallthru
      _
    // Predicated region
    $region34: #{forward.1} parent=1 // pred_check
      _
    $region35: #{forward.1} parent=1 // pred_check_branch
      %75 = sbr.rel (0) target = $region37
    $region36: #{forward.1} parent=1 // pred_region
      %s77 = ssub.s32 1024, 1024
      %78 = vsyncadd [#allocation8], %s77
      %s79 = sshll.u32 [#allocation9], 4
      %s80 = int_to_ptr.vmem [resolvable:$true] %s79
      %85 = dma.hbm_to_vmem [thread:$0]  %s8, 1024, %s80, [#allocation8], 64, 64, 4
    $region37: #{forward.1} parent=1 // pred_fallthru
      _
    // Predicated region
    $region38: #{forward.1} parent=1 // pred_check
      _
    $region39: #{forward.1} parent=1 // pred_check_branch
      %87 = sbr.rel (0) target = $region41
    $region40: #{forward.1} parent=1 // pred_region
      _
    $region41: #{forward.1} parent=1 // pred_fallthru
      _
    // Predicated region
    $region42: #{forward.1} parent=1 // pred_check
      _
    $region43: #{forward.1} parent=1 // pred_check_branch
      %89 = sbr.rel (0) target = $region45
    $region44: #{forward.1} parent=1 // pred_region
      %90 = dma.done [#allocation3], 1024
    $region45: #{forward.1} parent=1 // pred_fallthru
      _
    // Predicated region
    $region46: #{forward.1} parent=1 // pred_check
      _
    $region47: #{forward.1} parent=1 // pred_check_branch
      %92 = sbr.rel (0) target = $region49
    $region48: #{forward.1} parent=1 // pred_region
      %93 = dma.done [#allocation5], 1024
    $region49: #{forward.1} parent=1 // pred_fallthru
      _
    // Predicated region
    $region50: #{forward.1} parent=1 // pred_check
      _
    $region51: #{forward.1} parent=1 // pred_check_branch
      %95 = sbr.rel (0) target = $region53
    $region52: #{forward.1} parent=1 // pred_region
      %96 = dma.done [#allocation5], 1024
    $region53: #{forward.1} parent=1 // pred_fallthru
      _
    // Predicated region
    $region54: #{forward.1} parent=1 // pred_check
      _
    $region55: #{forward.1} parent=1 // pred_check_branch
      %98 = sbr.rel (0) target = $region57
    $region56: #{forward.1} parent=1 // pred_region
      %99 = dma.done [#allocation8], 1024
    $region57: #{forward.1} parent=1 // pred_fallthru
      _
    // Predicated region
    $region58: #{forward.1} parent=1 // pred_check
      _
    $region59: #{forward.1} parent=1 // pred_check_branch
      %101 = sbr.rel (0) target = $region61
    $region60: #{forward.1} parent=1 // pred_region
      %102 = dma.done [#allocation8], 1024
    $region61: #{forward.1} parent=1 // pred_fallthru
      _
    %v104 = vld [vmem:[%s1] sm:$0xf]
    %v105 = vld [vmem:[%s1 + $0x4] sm:$0xf]
    %v106 = vld [vmem:[#allocation2] sm:$0xf]
    %v107 = vld [vmem:[#allocation2 + $0x4] sm:$0xf]
    %v108 = vld [vmem:[#allocation2 + $0x8] sm:$0xf]
    %v109 = vld [vmem:[#allocation2 + $0xc] sm:$0xf]
    %v110 = vld [vmem:[#allocation2 + $0x10] sm:$0xf]
    %v111 = vld [vmem:[#allocation2 + $0x14] sm:$0xf]
    %v112 = vld [vmem:[#allocation2 + $0x18] sm:$0xf]
    %v113 = vld [vmem:[#allocation2 + $0x1c] sm:$0xf]
    %v114 = vld [vmem:[#allocation2 + $0x20] sm:$0xf]
    %v115 = vld [vmem:[#allocation2 + $0x24] sm:$0xf]
    %v116 = vld [vmem:[#allocation2 + $0x28] sm:$0xf]
    %v117 = vld [vmem:[#allocation2 + $0x2c] sm:$0xf]
    %v118 = vld [vmem:[#allocation2 + $0x30] sm:$0xf]
    %v119 = vld [vmem:[#allocation2 + $0x34] sm:$0xf]
    %v120 = vld [vmem:[#allocation2 + $0x38] sm:$0xf]
    %v121 = vld [vmem:[#allocation2 + $0x3c] sm:$0xf]
    %v122 = vld [vmem:[%s3] sm:$0x1]
    %v124 = vlaneseq
    %v125 = vshrl.u32 %v124, 7
    %v126 = vsub.s32 0, %v125
    %v127 = vrot.slane %v122, %v126
    %v131 = vunpack.c.l.b16 %v104
    %v132 = vunpack.c.l.b16 %v105
    %v133 = vpack.c.b16 %v132, %v131
    %v151 = vunpack.c.l.b16 %v106
    %v152 = vunpack.c.l.b16 %v107
    %v153 = vunpack.c.l.b16 %v108
    %v154 = vunpack.c.l.b16 %v109
    %v155 = vunpack.c.l.b16 %v110
    %v156 = vunpack.c.l.b16 %v111
    %v157 = vunpack.c.l.b16 %v112
    %v158 = vunpack.c.l.b16 %v113
    %v159 = vunpack.c.l.b16 %v114
    %v160 = vunpack.c.l.b16 %v115
    %v161 = vunpack.c.l.b16 %v116
    %v162 = vunpack.c.l.b16 %v117
    %v163 = vunpack.c.l.b16 %v118
    %v164 = vunpack.c.l.b16 %v119
    %v165 = vunpack.c.l.b16 %v120
    %v166 = vunpack.c.l.b16 %v121
    %v167 = vpack.c.b16 %v152, %v151
    %v168 = vpack.c.b16 %v154, %v153
    %v169 = vpack.c.b16 %v156, %v155
    %v170 = vpack.c.b16 %v158, %v157
    %v171 = vpack.c.b16 %v160, %v159
    %v172 = vpack.c.b16 %v162, %v161
    %v173 = vpack.c.b16 %v164, %v163
    %v174 = vpack.c.b16 %v166, %v165
    %183 = vmatprep.subr.bf16.mxu0 0
    %184 = vmatpush1.bf16.msra.mxu0 %v174
    %185 = vmatprep.subr.bf16.mxu0 0
    %186 = vmatpush1.bf16.msra.mxu0 %v173
    %187 = vmatprep.subr.bf16.mxu0 0
    %188 = vmatpush1.bf16.msra.mxu0 %v172
    %189 = vmatprep.subr.bf16.mxu0 0
    %190 = vmatpush1.bf16.msra.mxu0 %v171
    %191 = vmatprep.subr.bf16.mxu0 0
    %192 = vmatpush1.bf16.msra.mxu0 %v170
    %193 = vmatprep.subr.bf16.mxu0 0
    %194 = vmatpush1.bf16.msra.mxu0 %v169
    %195 = vmatprep.subr.bf16.mxu0 0
    %196 = vmatpush1.bf16.msra.mxu0 %v168
    %197 = vmatprep.subr.bf16.mxu0 0
    %198 = vmatpush1.bf16.msra.mxu0 %v167
    %199 = vmatprep.subr.bf16.mxu0 0
    %200 = vmatpush2.bf16.msra.mxu0 0
    %201 = vmatprep.subr.bf16.mxu0 0
    %202 = vmatpush2.bf16.msra.mxu0 0
    %203 = vmatprep.subr.bf16.mxu0 0
    %204 = vmatpush2.bf16.msra.mxu0 0
    %205 = vmatprep.subr.bf16.mxu0 0
    %206 = vmatpush2.bf16.msra.mxu0 0
    %207 = vmatprep.subr.bf16.mxu0 0
    %208 = vmatpush2.bf16.msra.mxu0 0
    %209 = vmatprep.subr.bf16.mxu0 0
    %210 = vmatpush2.bf16.msra.mxu0 0
    %211 = vmatprep.subr.bf16.mxu0 0
    %212 = vmatpush2.bf16.msra.mxu0 0
    %213 = vmatprep.subr.bf16.mxu0 0
    %214 = vmatpush2.bf16.msra.mxu0 0
    %215 = vmatprep.mubr.bf16.mxu0 0
    %216 = vmatmul.mubr.bf16.gmra.mxu0 %v133
    %v217 = vpop.f32.mrf.mxu0
    %v218 = vadd.f32 %v127, %v217
    %v219 = vpop.f32.mrf.mxu0
    %v220 = vpop.f32.mrf.mxu0
    %v221 = vadd.f32 %v127, %v220
    %v222 = vpop.f32.mrf.mxu0
    %223 = vdwg.mxu0
    %v224 = vpack.c.bf16 %v221, %v218
    %v225 = vld [vmem:[%s0] sm:$0xf]
    %v226 = vld [vmem:[%s0 + $0x4] sm:$0xf]
    %v227 = vld [vmem:[#allocation4] sm:$0xf]
    %v228 = vld [vmem:[#allocation4 + $0x4] sm:$0xf]
    %v229 = vld [vmem:[#allocation4 + $0x8] sm:$0xf]
    %v230 = vld [vmem:[#allocation4 + $0xc] sm:$0xf]
    %v231 = vld [vmem:[#allocation4 + $0x10] sm:$0xf]
    %v232 = vld [vmem:[#allocation4 + $0x14] sm:$0xf]
    %v233 = vld [vmem:[#allocation4 + $0x18] sm:$0xf]
    %v234 = vld [vmem:[#allocation4 + $0x1c] sm:$0xf]
    %v235 = vld [vmem:[#allocation4 + $0x20] sm:$0xf]
    %v236 = vld [vmem:[#allocation4 + $0x24] sm:$0xf]
    %v237 = vld [vmem:[#allocation4 + $0x28] sm:$0xf]
    %v238 = vld [vmem:[#allocation4 + $0x2c] sm:$0xf]
    %v239 = vld [vmem:[#allocation4 + $0x30] sm:$0xf]
    %v240 = vld [vmem:[#allocation4 + $0x34] sm:$0xf]
    %v241 = vld [vmem:[#allocation4 + $0x38] sm:$0xf]
    %v242 = vld [vmem:[#allocation4 + $0x3c] sm:$0xf]
    %v243 = vld [vmem:[#allocation6] sm:$0xf]
    %v244 = vld [vmem:[#allocation6 + $0x4] sm:$0xf]
    %v245 = vld [vmem:[#allocation6 + $0x8] sm:$0xf]
    %v246 = vld [vmem:[#allocation6 + $0xc] sm:$0xf]
    %v247 = vld [vmem:[#allocation6 + $0x10] sm:$0xf]
    %v248 = vld [vmem:[#allocation6 + $0x14] sm:$0xf]
    %v249 = vld [vmem:[#allocation6 + $0x18] sm:$0xf]
    %v250 = vld [vmem:[#allocation6 + $0x1c] sm:$0xf]
    %v251 = vld [vmem:[#allocation6 + $0x20] sm:$0xf]
    %v252 = vld [vmem:[#allocation6 + $0x24] sm:$0xf]
    %v253 = vld [vmem:[#allocation6 + $0x28] sm:$0xf]
    %v254 = vld [vmem:[#allocation6 + $0x2c] sm:$0xf]
    %v255 = vld [vmem:[#allocation6 + $0x30] sm:$0xf]
    %v256 = vld [vmem:[#allocation6 + $0x34] sm:$0xf]
    %v257 = vld [vmem:[#allocation6 + $0x38] sm:$0xf]
    %v258 = vld [vmem:[#allocation6 + $0x3c] sm:$0xf]
    %v275 = vunpack.c.l.b16 %v243
    %v276 = vunpack.c.l.b16 %v244
    %v277 = vunpack.c.l.b16 %v245
    %v278 = vunpack.c.l.b16 %v246
    %v279 = vunpack.c.l.b16 %v247
    %v280 = vunpack.c.l.b16 %v248
    %v281 = vunpack.c.l.b16 %v249
    %v282 = vunpack.c.l.b16 %v250
    %v283 = vunpack.c.l.b16 %v251
    %v284 = vunpack.c.l.b16 %v252
    %v285 = vunpack.c.l.b16 %v253
    %v286 = vunpack.c.l.b16 %v254
    %v287 = vunpack.c.l.b16 %v255
    %v288 = vunpack.c.l.b16 %v256
    %v289 = vunpack.c.l.b16 %v257
    %v290 = vunpack.c.l.b16 %v258
    %v291 = vpack.c.b16 %v276, %v275
    %v292 = vpack.c.b16 %v278, %v277
    %v293 = vpack.c.b16 %v280, %v279
    %v294 = vpack.c.b16 %v282, %v281
    %v295 = vpack.c.b16 %v284, %v283
    %v296 = vpack.c.b16 %v286, %v285
    %v297 = vpack.c.b16 %v288, %v287
    %v298 = vpack.c.b16 %v290, %v289
    %307 = vmatprep.subr.bf16.mxu0 0
    %308 = vmatpush1.bf16.msra.mxu0 %v298
    %309 = vmatprep.subr.bf16.mxu0 0
    %310 = vmatpush1.bf16.msra.mxu0 %v297
    %311 = vmatprep.subr.bf16.mxu0 0
    %312 = vmatpush1.bf16.msra.mxu0 %v296
    %313 = vmatprep.subr.bf16.mxu0 0
    %314 = vmatpush1.bf16.msra.mxu0 %v295
    %315 = vmatprep.subr.bf16.mxu0 0
    %316 = vmatpush1.bf16.msra.mxu0 %v294
    %317 = vmatprep.subr.bf16.mxu0 0
    %318 = vmatpush1.bf16.msra.mxu0 %v293
    %319 = vmatprep.subr.bf16.mxu0 0
    %320 = vmatpush1.bf16.msra.mxu0 %v292
    %321 = vmatprep.subr.bf16.mxu0 0
    %322 = vmatpush1.bf16.msra.mxu0 %v291
    %323 = vmatprep.subr.bf16.mxu0 0
    %324 = vmatpush2.bf16.msra.mxu0 0
    %325 = vmatprep.subr.bf16.mxu0 0
    %326 = vmatpush2.bf16.msra.mxu0 0
    %327 = vmatprep.subr.bf16.mxu0 0
    %328 = vmatpush2.bf16.msra.mxu0 0
    %329 = vmatprep.subr.bf16.mxu0 0
    %330 = vmatpush2.bf16.msra.mxu0 0
    %331 = vmatprep.subr.bf16.mxu0 0
    %332 = vmatpush2.bf16.msra.mxu0 0
    %333 = vmatprep.subr.bf16.mxu0 0
    %334 = vmatpush2.bf16.msra.mxu0 0
    %335 = vmatprep.subr.bf16.mxu0 0
    %336 = vmatpush2.bf16.msra.mxu0 0
    %337 = vmatprep.subr.bf16.mxu0 0
    %338 = vmatpush2.bf16.msra.mxu0 0
    %339 = vmatprep.mubr.bf16.mxu0 0
    %340 = vmatmul.mubr.bf16.gmra.mxu0 %v224
    %v341 = vpop.f32.mrf.mxu0
    %v342 = vadd.f32 0.0, %v341
    %v343 = vpop.f32.mrf.mxu0
    %v344 = vpop.f32.mrf.mxu0
    %v345 = vadd.f32 0.0, %v344
    %v346 = vpop.f32.mrf.mxu0
    %347 = vdwg.mxu0
    %v350 = vunpack.c.l.b16 %v225
    %v351 = vunpack.c.l.b16 %v226
    %v352 = vpack.c.b16 %v351, %v350
    %v370 = vunpack.c.l.b16 %v227
    %v371 = vunpack.c.l.b16 %v228
    %v372 = vunpack.c.l.b16 %v229
    %v373 = vunpack.c.l.b16 %v230
    %v374 = vunpack.c.l.b16 %v231
    %v375 = vunpack.c.l.b16 %v232
    %v376 = vunpack.c.l.b16 %v233
    %v377 = vunpack.c.l.b16 %v234
    %v378 = vunpack.c.l.b16 %v235
    %v379 = vunpack.c.l.b16 %v236
    %v380 = vunpack.c.l.b16 %v237
    %v381 = vunpack.c.l.b16 %v238
    %v382 = vunpack.c.l.b16 %v239
    %v383 = vunpack.c.l.b16 %v240
    %v384 = vunpack.c.l.b16 %v241
    %v385 = vunpack.c.l.b16 %v242
    %v386 = vpack.c.b16 %v371, %v370
    %v387 = vpack.c.b16 %v373, %v372
    %v388 = vpack.c.b16 %v375, %v374
    %v389 = vpack.c.b16 %v377, %v376
    %v390 = vpack.c.b16 %v379, %v378
    %v391 = vpack.c.b16 %v381, %v380
    %v392 = vpack.c.b16 %v383, %v382
    %v393 = vpack.c.b16 %v385, %v384
    %402 = vmatprep.subr.bf16.mxu0 0
    %403 = vmatpush1.bf16.msra.mxu0 %v393
    %404 = vmatprep.subr.bf16.mxu0 0
    %405 = vmatpush1.bf16.msra.mxu0 %v392
    %406 = vmatprep.subr.bf16.mxu0 0
    %407 = vmatpush1.bf16.msra.mxu0 %v391
    %408 = vmatprep.subr.bf16.mxu0 0
    %409 = vmatpush1.bf16.msra.mxu0 %v390
    %410 = vmatprep.subr.bf16.mxu0 0
    %411 = vmatpush1.bf16.msra.mxu0 %v389
    %412 = vmatprep.subr.bf16.mxu0 0
    %413 = vmatpush1.bf16.msra.mxu0 %v388
    %414 = vmatprep.subr.bf16.mxu0 0
    %415 = vmatpush1.bf16.msra.mxu0 %v387
    %416 = vmatprep.subr.bf16.mxu0 0
    %417 = vmatpush1.bf16.msra.mxu0 %v386
    %418 = vmatprep.subr.bf16.mxu0 0
    %419 = vmatpush2.bf16.msra.mxu0 0
    %420 = vmatprep.subr.bf16.mxu0 0
    %421 = vmatpush2.bf16.msra.mxu0 0
    %422 = vmatprep.subr.bf16.mxu0 0
    %423 = vmatpush2.bf16.msra.mxu0 0
    %424 = vmatprep.subr.bf16.mxu0 0
    %425 = vmatpush2.bf16.msra.mxu0 0
    %426 = vmatprep.subr.bf16.mxu0 0
    %427 = vmatpush2.bf16.msra.mxu0 0
    %428 = vmatprep.subr.bf16.mxu0 0
    %429 = vmatpush2.bf16.msra.mxu0 0
    %430 = vmatprep.subr.bf16.mxu0 0
    %431 = vmatpush2.bf16.msra.mxu0 0
    %432 = vmatprep.subr.bf16.mxu0 0
    %433 = vmatpush2.bf16.msra.mxu0 0
    %434 = vmatprep.mubr.bf16.mxu0 0
    %435 = vmatmul.mubr.bf16.gmra.mxu0 %v352
    %v436 = vpop.f32.mrf.mxu0
    %v437 = vadd.f32 %v342, %v436
    %v438 = vpop.f32.mrf.mxu0
    %v439 = vpop.f32.mrf.mxu0
    %v440 = vadd.f32 %v345, %v439
    %v441 = vpop.f32.mrf.mxu0
    %442 = vdwg.mxu0
    %v444 = vunpack.c.l.b16 %v224
    %v445 = vunpack.c.h.b16 %v224
    %v446 = vpack.c.b16 %v444, %v444
    %v447 = vpack.c.b16 %v445, %v445
    %v450 = vmul.bf16 %v225, %v446
    %v451 = vmul.bf16 %v226, %v447
    %v452 = vld [vmem:[#allocation7] sm:$0xf]
    %v453 = vld [vmem:[#allocation7 + $0x4] sm:$0xf]
    %v454 = vld [vmem:[#allocation7 + $0x8] sm:$0xf]
    %v455 = vld [vmem:[#allocation7 + $0xc] sm:$0xf]
    %v456 = vld [vmem:[#allocation7 + $0x10] sm:$0xf]
    %v457 = vld [vmem:[#allocation7 + $0x14] sm:$0xf]
    %v458 = vld [vmem:[#allocation7 + $0x18] sm:$0xf]
    %v459 = vld [vmem:[#allocation7 + $0x1c] sm:$0xf]
    %v460 = vld [vmem:[#allocation7 + $0x20] sm:$0xf]
    %v461 = vld [vmem:[#allocation7 + $0x24] sm:$0xf]
    %v462 = vld [vmem:[#allocation7 + $0x28] sm:$0xf]
    %v463 = vld [vmem:[#allocation7 + $0x2c] sm:$0xf]
    %v464 = vld [vmem:[#allocation7 + $0x30] sm:$0xf]
    %v465 = vld [vmem:[#allocation7 + $0x34] sm:$0xf]
    %v466 = vld [vmem:[#allocation7 + $0x38] sm:$0xf]
    %v467 = vld [vmem:[#allocation7 + $0x3c] sm:$0xf]
    %v470 = vunpack.c.l.b16 %v450
    %v471 = vunpack.c.l.b16 %v451
    %v472 = vpack.c.b16 %v471, %v470
    %v490 = vunpack.c.l.b16 %v452
    %v491 = vunpack.c.l.b16 %v453
    %v492 = vunpack.c.l.b16 %v454
    %v493 = vunpack.c.l.b16 %v455
    %v494 = vunpack.c.l.b16 %v456
    %v495 = vunpack.c.l.b16 %v457
    %v496 = vunpack.c.l.b16 %v458
    %v497 = vunpack.c.l.b16 %v459
    %v498 = vunpack.c.l.b16 %v460
    %v499 = vunpack.c.l.b16 %v461
    %v500 = vunpack.c.l.b16 %v462
    %v501 = vunpack.c.l.b16 %v463
    %v502 = vunpack.c.l.b16 %v464
    %v503 = vunpack.c.l.b16 %v465
    %v504 = vunpack.c.l.b16 %v466
    %v505 = vunpack.c.l.b16 %v467
    %v506 = vpack.c.b16 %v491, %v490
    %v507 = vpack.c.b16 %v493, %v492
    %v508 = vpack.c.b16 %v495, %v494
    %v509 = vpack.c.b16 %v497, %v496
    %v510 = vpack.c.b16 %v499, %v498
    %v511 = vpack.c.b16 %v501, %v500
    %v512 = vpack.c.b16 %v503, %v502
    %v513 = vpack.c.b16 %v505, %v504
    %522 = vmatprep.subr.bf16.mxu0 0
    %523 = vmatpush1.bf16.msra.mxu0 %v513
    %524 = vmatprep.subr.bf16.mxu0 0
    %525 = vmatpush1.bf16.msra.mxu0 %v512
    %526 = vmatprep.subr.bf16.mxu0 0
    %527 = vmatpush1.bf16.msra.mxu0 %v511
    %528 = vmatprep.subr.bf16.mxu0 0
    %529 = vmatpush1.bf16.msra.mxu0 %v510
    %530 = vmatprep.subr.bf16.mxu0 0
    %531 = vmatpush1.bf16.msra.mxu0 %v509
    %532 = vmatprep.subr.bf16.mxu0 0
    %533 = vmatpush1.bf16.msra.mxu0 %v508
    %534 = vmatprep.subr.bf16.mxu0 0
    %535 = vmatpush1.bf16.msra.mxu0 %v507
    %536 = vmatprep.subr.bf16.mxu0 0
    %537 = vmatpush1.bf16.msra.mxu0 %v506
    %538 = vmatprep.subr.bf16.mxu0 0
    %539 = vmatpush2.bf16.msra.mxu0 0
    %540 = vmatprep.subr.bf16.mxu0 0
    %541 = vmatpush2.bf16.msra.mxu0 0
    %542 = vmatprep.subr.bf16.mxu0 0
    %543 = vmatpush2.bf16.msra.mxu0 0
    %544 = vmatprep.subr.bf16.mxu0 0
    %545 = vmatpush2.bf16.msra.mxu0 0
    %546 = vmatprep.subr.bf16.mxu0 0
    %547 = vmatpush2.bf16.msra.mxu0 0
    %548 = vmatprep.subr.bf16.mxu0 0
    %549 = vmatpush2.bf16.msra.mxu0 0
    %550 = vmatprep.subr.bf16.mxu0 0
    %551 = vmatpush2.bf16.msra.mxu0 0
    %552 = vmatprep.subr.bf16.mxu0 0
    %553 = vmatpush2.bf16.msra.mxu0 0
    %554 = vmatprep.mubr.bf16.mxu0 0
    %555 = vmatmul.mubr.bf16.gmra.mxu0 %v472
    %v556 = vpop.f32.mrf.mxu0
    %v557 = vadd.f32 0.0, %v556
    %v558 = vpop.f32.mrf.mxu0
    %v559 = vpop.f32.mrf.mxu0
    %v560 = vadd.f32 0.0, %v559
    %v561 = vpop.f32.mrf.mxu0
    %562 = vdwg.mxu0
    %v563 = vadd.f32 %v437, %v557
    %v564 = vadd.f32 %v440, %v560
    %v565 = vld [vmem:[%s7] sm:$0x1]
    %v567 = vlaneseq
    %v568 = vshrl.u32 %v567, 7
    %v569 = vsub.s32 0, %v568
    %v570 = vrot.slane %v565, %v569
    %v572 = vadd.f32 %v563, %v570
    %v573 = vadd.f32 %v564, %v570
    %vm574 = vcmp.gt.f32.partialorder %v572, 0.0
    %vm575 = vcmp.gt.f32.partialorder %v573, 0.0
    %v576 = vmin.f32 %v572, 0.0
    %v577 = vmin.f32 %v573, 0.0
    %v578 = vmul.f32 %v576, 1.442695
    %v579 = vpow.pop %v578
    %v580 = vmul.f32 %v577, 1.442695
    %v581 = vpow.pop %v580
    %v582 = vsub.f32 %v579, 1.0
    %v583 = vsub.f32 %v581, 1.0
    %v584 = vsel %vm574, %v572, %v582
    %v585 = vsel %vm575, %v573, %v583
    %v586 = vpack.c.bf16 %v585, %v584
    %v587 = vld [vmem:[#allocation9] sm:$0xf]
    %v588 = vld [vmem:[#allocation9 + $0x4] sm:$0xf]
    %v589 = vld [vmem:[#allocation9 + $0x8] sm:$0xf]
    %v590 = vld [vmem:[#allocation9 + $0xc] sm:$0xf]
    %v591 = vld [vmem:[#allocation9 + $0x10] sm:$0xf]
    %v592 = vld [vmem:[#allocation9 + $0x14] sm:$0xf]
    %v593 = vld [vmem:[#allocation9 + $0x18] sm:$0xf]
    %v594 = vld [vmem:[#allocation9 + $0x1c] sm:$0xf]
    %v595 = vld [vmem:[#allocation9 + $0x20] sm:$0xf]
    %v596 = vld [vmem:[#allocation9 + $0x24] sm:$0xf]
    %v597 = vld [vmem:[#allocation9 + $0x28] sm:$0xf]
    %v598 = vld [vmem:[#allocation9 + $0x2c] sm:$0xf]
    %v599 = vld [vmem:[#allocation9 + $0x30] sm:$0xf]
    %v600 = vld [vmem:[#allocation9 + $0x34] sm:$0xf]
    %v601 = vld [vmem:[#allocation9 + $0x38] sm:$0xf]
    %v602 = vld [vmem:[#allocation9 + $0x3c] sm:$0xf]
    %v603 = vld [vmem:[%s9] sm:$0x1]
    %v605 = vlaneseq
    %v606 = vshrl.u32 %v605, 7
    %v607 = vsub.s32 0, %v606
    %v608 = vrot.slane %v603, %v607
    %v626 = vunpack.c.l.b16 %v587
    %v627 = vunpack.c.l.b16 %v588
    %v628 = vunpack.c.l.b16 %v589
    %v629 = vunpack.c.l.b16 %v590
    %v630 = vunpack.c.l.b16 %v591
    %v631 = vunpack.c.l.b16 %v592
    %v632 = vunpack.c.l.b16 %v593
    %v633 = vunpack.c.l.b16 %v594
    %v634 = vunpack.c.l.b16 %v595
    %v635 = vunpack.c.l.b16 %v596
    %v636 = vunpack.c.l.b16 %v597
    %v637 = vunpack.c.l.b16 %v598
    %v638 = vunpack.c.l.b16 %v599
    %v639 = vunpack.c.l.b16 %v600
    %v640 = vunpack.c.l.b16 %v601
    %v641 = vunpack.c.l.b16 %v602
    %v642 = vpack.c.b16 %v627, %v626
    %v643 = vpack.c.b16 %v629, %v628
    %v644 = vpack.c.b16 %v631, %v630
    %v645 = vpack.c.b16 %v633, %v632
    %v646 = vpack.c.b16 %v635, %v634
    %v647 = vpack.c.b16 %v637, %v636
    %v648 = vpack.c.b16 %v639, %v638
    %v649 = vpack.c.b16 %v641, %v640
    %658 = vmatprep.subr.bf16.mxu0 0
    %659 = vmatpush1.bf16.msra.mxu0 %v649
    %660 = vmatprep.subr.bf16.mxu0 0
    %661 = vmatpush1.bf16.msra.mxu0 %v648
    %662 = vmatprep.subr.bf16.mxu0 0
    %663 = vmatpush1.bf16.msra.mxu0 %v647
    %664 = vmatprep.subr.bf16.mxu0 0
    %665 = vmatpush1.bf16.msra.mxu0 %v646
    %666 = vmatprep.subr.bf16.mxu0 0
    %667 = vmatpush1.bf16.msra.mxu0 %v645
    %668 = vmatprep.subr.bf16.mxu0 0
    %669 = vmatpush1.bf16.msra.mxu0 %v644
    %670 = vmatprep.subr.bf16.mxu0 0
    %671 = vmatpush1.bf16.msra.mxu0 %v643
    %672 = vmatprep.subr.bf16.mxu0 0
    %673 = vmatpush1.bf16.msra.mxu0 %v642
    %674 = vmatprep.subr.bf16.mxu0 0
    %675 = vmatpush2.bf16.msra.mxu0 0
    %676 = vmatprep.subr.bf16.mxu0 0
    %677 = vmatpush2.bf16.msra.mxu0 0
    %678 = vmatprep.subr.bf16.mxu0 0
    %679 = vmatpush2.bf16.msra.mxu0 0
    %680 = vmatprep.subr.bf16.mxu0 0
    %681 = vmatpush2.bf16.msra.mxu0 0
    %682 = vmatprep.subr.bf16.mxu0 0
    %683 = vmatpush2.bf16.msra.mxu0 0
    %684 = vmatprep.subr.bf16.mxu0 0
    %685 = vmatpush2.bf16.msra.mxu0 0
    %686 = vmatprep.subr.bf16.mxu0 0
    %687 = vmatpush2.bf16.msra.mxu0 0
    %688 = vmatprep.subr.bf16.mxu0 0
    %689 = vmatpush2.bf16.msra.mxu0 0
    %690 = vmatprep.mubr.bf16.mxu0 0
    %691 = vmatmul.mubr.bf16.gmra.mxu0 %v586
    %v692 = vpop.f32.mrf.mxu0
    %v693 = vadd.f32 %v608, %v692
    %v694 = vpop.f32.mrf.mxu0
    %v695 = vpop.f32.mrf.mxu0
    %v696 = vadd.f32 %v608, %v695
    %v697 = vpop.f32.mrf.mxu0
    %698 = vdwg.mxu0
    %699 = vst [vmem:[%s10] sm:$0xff] %v693
    %700 = vst [vmem:[%s10 + $0x8] sm:$0xff] %v696
    // Predicated region
    $region62: #{forward.1} parent=1 // pred_check
      _
    $region63: #{forward.1} parent=1 // pred_check_branch
      %702 = sbr.rel (0) target = $region65
    $region64: #{forward.1} parent=1 // pred_region
      _
    $region65: #{forward.1} parent=1 // pred_fallthru
      _
    // Predicated region
    $region66: #{forward.1} parent=1 // pred_check
      _
    $region67: #{forward.1} parent=1 // pred_check_branch
      %704 = sbr.rel (0) target = $region69
    $region68: #{forward.1} parent=1 // pred_region
      _
    $region69: #{forward.1} parent=1 // pred_fallthru
      _
    %705 = vsyncpa [#allocation3], 1
    %706 = vsyncpa [#allocation5], 1
    %707 = vsyncpa [#allocation8], 1

</llo_original>
